<compile_context>
chip_gen: v7x
topology: tpu7x:2x2x1
jax: 0.10.0
libtpu: 0.0.40
codegen_flags: <defaults>
</compile_context>

<pallas_src>
import functools

import jax
import jax.numpy as jnp
import numpy as np
from jax.experimental import pallas as pl
from jax.experimental.pallas import tpu as pltpu


def _lightgcn_kernel(adj_ref, x_ref, out_ref, x_scr, *,
                     num_users, num_items, num_layers):
    U, I = num_users, num_items

    # ---- normalized propagation weights (shared by every layer) ----
    user_item = (adj_ref[...] != 0).astype(jnp.float32)            # [U, I]
    deg_u = jnp.sum(user_item, axis=1, keepdims=True)              # [U, 1]
    deg_i = jnp.sum(user_item, axis=0, keepdims=True)              # [1, I]
    # rsqrt outer product == nan_to_num(user_item / sqrt(deg_u * deg_i)):
    # wherever a degree is 0 the corresponding user_item entries are 0 anyway.
    inv_u = jnp.where(deg_u > 0.0, jax.lax.rsqrt(deg_u), 0.0)      # EUP
    inv_i = jnp.where(deg_i > 0.0, jax.lax.rsqrt(deg_i), 0.0)      # EUP
    weights = user_item * inv_u * inv_i                            # [U, I] f32

    # bf16 MXU operands; the transpose is hoisted out of the layer loop.
    w_bf = weights.astype(jnp.bfloat16)                            # [U, I]
    wT_bf = weights.T.astype(jnp.bfloat16)                         # [I, U]

    alpha = 1.0 / (1.0 + num_layers)
    last = num_layers - 1

    for layer in range(num_layers):
        # Layer 0 reads the pristine embeddings directly from the input block;
        # later layers read the running x from the VMEM scratch.
        src = x_ref if layer == 0 else x_scr
        xu = src[:U, :].astype(jnp.bfloat16)                       # [U, D]
        xi = src[U:, :].astype(jnp.bfloat16)                       # [I, D]
        agg_items = jnp.dot(wT_bf, xu,
                            preferred_element_type=jnp.float32)    # [I, D]
        agg_users = jnp.dot(w_bf, xi,
                            preferred_element_type=jnp.float32)    # [U, D]

        # New x is [items; users] row order, exactly as LightGCNConv.forward.
        # Only materialize it if another layer will consume it.
        if layer != last:
            x_scr[:I, :] = agg_items
            x_scr[I:, :] = agg_users

        # Layer-sum accumulated straight into out_ref; the final alpha scale
        # is folded into the last layer's store (no extra full pass).
        if layer == 0 and layer == last:
            out_ref[:I, :] = agg_items * alpha
            out_ref[I:, :] = agg_users * alpha
        elif layer == 0:
            out_ref[:I, :] = agg_items
            out_ref[I:, :] = agg_users
        elif layer == last:
            out_ref[:I, :] = (out_ref[:I, :] + agg_items) * alpha
            out_ref[I:, :] = (out_ref[I:, :] + agg_users) * alpha
        else:
            out_ref[:I, :] += agg_items
            out_ref[I:, :] += agg_users


def lightgcn_forward(x, adj, *, num_users, num_items, num_layers):
    n_total, emb = x.shape
    assert n_total == num_users + num_items
    assert num_layers >= 1
    # Static ref slices at row num_users / num_items must be sublane-aligned.
    assert num_users % 8 == 0 and num_items % 8 == 0

    # Lane-dense layout: pad embedding dim to a multiple of 128 (padded
    # columns stay zero through the linear propagation and are sliced off).
    d_pad = pl.cdiv(emb, 128) * 128
    x_p = jnp.pad(x.astype(jnp.float32), ((0, 0), (0, d_pad - emb)))
    adj_i8 = (adj != 0).astype(jnp.int8)

    kernel = functools.partial(
        _lightgcn_kernel,
        num_users=num_users,
        num_items=num_items,
        num_layers=num_layers,
    )

    cost = pl.CostEstimate(
        flops=4 * num_layers * num_users * num_items * d_pad,
        transcendentals=num_users + num_items,
        bytes_accessed=num_users * num_items + 2 * n_total * d_pad * 4,
    )

    out_p = pl.pallas_call(
        kernel,
        out_shape=jax.ShapeDtypeStruct((n_total, d_pad), jnp.float32),
        grid=(1,),
        in_specs=[
            pl.BlockSpec((num_users, num_items), lambda i: (0, 0)),
            pl.BlockSpec((n_total, d_pad), lambda i: (0, 0)),
        ],
        out_specs=pl.BlockSpec((n_total, d_pad), lambda i: (0, 0)),
        scratch_shapes=[pltpu.VMEM((n_total, d_pad), jnp.float32)],
        compiler_params=pltpu.CompilerParams(
            dimension_semantics=("arbitrary",)),
        cost_estimate=cost,
    )(adj_i8, x_p)
    # Drop the lane padding.
    return out_p[:, :emb]


def lightgcn_reference(x, adj, *, num_users, num_items, num_layers):
    """Pure-JAX f32 reference mirroring the PyTorch module."""
    user_item = (adj != 0).astype(jnp.float32)
    deg_u = user_item.sum(axis=1, keepdims=True)
    deg_i = user_item.sum(axis=0, keepdims=True)
    d = deg_u * deg_i
    w = jnp.where(d > 0, user_item / jnp.sqrt(d), 0.0)
    xs = []
    for _ in range(num_layers):
        x = jnp.concatenate([w.T @ x[:num_users], w @ x[num_users:]], axis=0)
        xs.append(x)
    return sum(xs) * (1.0 / (1.0 + num_layers))


if __name__ == "__main__":
    # config equivalent: n_users=16, m_items=24, embedding_size=32, num_layers=3
    num_users, num_items, emb, num_layers = 16, 24, 32, 3
    n_total = num_users + num_items

    key = jax.random.PRNGKey(0)
    k_emb, k_adj = jax.random.split(key)

    # nn.Embedding(num_users + num_items, embedding_size), normal init std=0.1
    x = 0.1 * jax.random.normal(k_emb, (n_total, emb), dtype=jnp.float32)
    # dense edge_index (interaction matrix); forward applies nonzero() to it
    adj = jax.random.bernoulli(k_adj, p=0.3, shape=(num_users, num_items)).astype(
        jnp.float32)

    out = lightgcn_forward(x, adj, num_users=num_users, num_items=num_items,
                           num_layers=num_layers)
    out = jax.block_until_ready(out)

    ref = lightgcn_reference(x, adj, num_users=num_users, num_items=num_items,
                             num_layers=num_layers)
    # bf16 MXU operands -> looser tolerance than the pure-f32 reference.
    np.testing.assert_allclose(np.asarray(out), np.asarray(ref),
                               rtol=2e-2, atol=2e-3)

    print("KERNEL_OK")
</pallas_src>

<mosaic_0001>
module attributes {stable_mosaic.version = 11 : i64} {
  func.func @_lightgcn_kernel(%arg0: i32, %arg1: memref<16x24xi8, #tpu.memory_space<vmem>>, %arg2: memref<40x128xf32, #tpu.memory_space<vmem>>, %arg3: memref<40x128xf32, #tpu.memory_space<vmem>>, %arg4: memref<40x128xf32, #tpu.memory_space<vmem>>) attributes {dimension_semantics = [#tpu.dimension_semantics<arbitrary>], iteration_bounds = array<i64: 1>, scalar_prefetch = 0 : i64, scratch_operands = 1 : i64, tpu.core_type = #tpu.core_type<tc>, window_params = [{pipeline_mode = #tpu.pipeline_mode<synchronous>, transform_indices = @transform_0, window_bounds = array<i64: 16, 24>}, {pipeline_mode = #tpu.pipeline_mode<synchronous>, transform_indices = @transform_1, window_bounds = array<i64: 40, 128>}, {pipeline_mode = #tpu.pipeline_mode<synchronous>, transform_indices = @transform_2, window_bounds = array<i64: 40, 128>}]} {
    %c0 = arith.constant 0 : index
    %c0_0 = arith.constant 0 : index
    %0 = vector.load %arg1[%c0, %c0_0] : memref<16x24xi8, #tpu.memory_space<vmem>>, vector<16x24xi8>
    %c0_i8 = arith.constant 0 : i8
    %1 = vector.broadcast %c0_i8 : i8 to vector<16x24xi8>
    %2 = arith.cmpi ne, %0, %1 : vector<16x24xi8>
    %3 = arith.extui %2 : vector<16x24xi1> to vector<16x24xi32>
    %4 = arith.sitofp %3 : vector<16x24xi32> to vector<16x24xf32>
    %cst = arith.constant dense<0.000000e+00> : vector<16xf32>
    %5 = vector.multi_reduction <add>, %4, %cst [1] : vector<16x24xf32> to vector<16xf32>
    %6 = vector.shape_cast %5 : vector<16xf32> to vector<16x1xf32>
    %cst_1 = arith.constant dense<0.000000e+00> : vector<24xf32>
    %7 = vector.multi_reduction <add>, %4, %cst_1 [0] : vector<16x24xf32> to vector<24xf32>
    %8 = vector.shape_cast %7 : vector<24xf32> to vector<1x24xf32>
    %cst_2 = arith.constant 0.000000e+00 : f32
    %9 = vector.broadcast %cst_2 : f32 to vector<16x1xf32>
    %10 = arith.cmpf ogt, %6, %9 : vector<16x1xf32>
    %11 = math.rsqrt %6 : vector<16x1xf32>
    %cst_3 = arith.constant 0.000000e+00 : f32
    %12 = vector.broadcast %cst_3 : f32 to vector<16x1xf32>
    %13 = arith.select %10, %11, %12 : vector<16x1xi1>, vector<16x1xf32>
    %cst_4 = arith.constant 0.000000e+00 : f32
    %14 = vector.broadcast %cst_4 : f32 to vector<1x24xf32>
    %15 = arith.cmpf ogt, %8, %14 : vector<1x24xf32>
    %16 = math.rsqrt %8 : vector<1x24xf32>
    %cst_5 = arith.constant 0.000000e+00 : f32
    %17 = vector.broadcast %cst_5 : f32 to vector<1x24xf32>
    %18 = arith.select %15, %16, %17 : vector<1x24xi1>, vector<1x24xf32>
    %19 = vector.broadcast %13 : vector<16x1xf32> to vector<16x24xf32>
    %20 = arith.mulf %4, %19 : vector<16x24xf32>
    %21 = vector.broadcast %18 : vector<1x24xf32> to vector<16x24xf32>
    %22 = arith.mulf %20, %21 : vector<16x24xf32>
    %23 = arith.truncf %22 : vector<16x24xf32> to vector<16x24xbf16>
    %24 = tpu.transpose %22, [1, 0] : vector<16x24xf32> -> vector<24x16xf32>
    %25 = arith.truncf %24 : vector<24x16xf32> to vector<24x16xbf16>
    %c0_6 = arith.constant 0 : index
    %c0_7 = arith.constant 0 : index
    %26 = vector.load %arg2[%c0_6, %c0_7] : memref<40x128xf32, #tpu.memory_space<vmem>>, vector<16x128xf32>
    %27 = arith.truncf %26 : vector<16x128xf32> to vector<16x128xbf16>
    %c16 = arith.constant 16 : index
    %c0_8 = arith.constant 0 : index
    %28 = vector.load %arg2[%c16, %c0_8] : memref<40x128xf32, #tpu.memory_space<vmem>>, vector<24x128xf32>
    %29 = arith.truncf %28 : vector<24x128xf32> to vector<24x128xbf16>
    %cst_9 = arith.constant dense<0.000000e+00> : vector<24x128xf32>
    %30 = tpu.matmul %25, %27, %cst_9 {dimension_numbers = #tpu.dot_dimension_numbers<[1], [0], [0], [1], [0, 0, 1, 1], [], []>} : vector<24x16xbf16>, vector<16x128xbf16>, vector<24x128xf32> -> vector<24x128xf32>
    %cst_10 = arith.constant dense<0.000000e+00> : vector<16x128xf32>
    %31 = tpu.matmul %23, %29, %cst_10 {dimension_numbers = #tpu.dot_dimension_numbers<[1], [0], [0], [1], [0, 0, 1, 1], [], []>} : vector<16x24xbf16>, vector<24x128xbf16>, vector<16x128xf32> -> vector<16x128xf32>
    %c0_11 = arith.constant 0 : index
    %c0_12 = arith.constant 0 : index
    %32 = vector.load %arg4[%c0_11, %c0_12] : memref<40x128xf32, #tpu.memory_space<vmem>>, vector<24x128xf32>
    tpu.vector_store %arg4[%c0_11, %c0_12], %30 {strides = array<i32>} : memref<40x128xf32, #tpu.memory_space<vmem>>, vector<24x128xf32>,
    %c24 = arith.constant 24 : index
    %c0_13 = arith.constant 0 : index
    %33 = vector.load %arg4[%c24, %c0_13] : memref<40x128xf32, #tpu.memory_space<vmem>>, vector<16x128xf32>
    tpu.vector_store %arg4[%c24, %c0_13], %31 {strides = array<i32>} : memref<40x128xf32, #tpu.memory_space<vmem>>, vector<16x128xf32>,
    %c0_14 = arith.constant 0 : index
    %c0_15 = arith.constant 0 : index
    %34 = vector.load %arg3[%c0_14, %c0_15] : memref<40x128xf32, #tpu.memory_space<vmem>>, vector<24x128xf32>
    tpu.vector_store %arg3[%c0_14, %c0_15], %30 {strides = array<i32>} : memref<40x128xf32, #tpu.memory_space<vmem>>, vector<24x128xf32>,
    %c24_16 = arith.constant 24 : index
    %c0_17 = arith.constant 0 : index
    %35 = vector.load %arg3[%c24_16, %c0_17] : memref<40x128xf32, #tpu.memory_space<vmem>>, vector<16x128xf32>
    tpu.vector_store %arg3[%c24_16, %c0_17], %31 {strides = array<i32>} : memref<40x128xf32, #tpu.memory_space<vmem>>, vector<16x128xf32>,
    %c0_18 = arith.constant 0 : index
    %c0_19 = arith.constant 0 : index
    %36 = vector.load %arg4[%c0_18, %c0_19] : memref<40x128xf32, #tpu.memory_space<vmem>>, vector<16x128xf32>
    %37 = arith.truncf %36 : vector<16x128xf32> to vector<16x128xbf16>
    %c16_20 = arith.constant 16 : index
    %c0_21 = arith.constant 0 : index
    %38 = vector.load %arg4[%c16_20, %c0_21] : memref<40x128xf32, #tpu.memory_space<vmem>>, vector<24x128xf32>
    %39 = arith.truncf %38 : vector<24x128xf32> to vector<24x128xbf16>
    %cst_22 = arith.constant dense<0.000000e+00> : vector<24x128xf32>
    %40 = tpu.matmul %25, %37, %cst_22 {dimension_numbers = #tpu.dot_dimension_numbers<[1], [0], [0], [1], [0, 0, 1, 1], [], []>} : vector<24x16xbf16>, vector<16x128xbf16>, vector<24x128xf32> -> vector<24x128xf32>
    %cst_23 = arith.constant dense<0.000000e+00> : vector<16x128xf32>
    %41 = tpu.matmul %23, %39, %cst_23 {dimension_numbers = #tpu.dot_dimension_numbers<[1], [0], [0], [1], [0, 0, 1, 1], [], []>} : vector<16x24xbf16>, vector<24x128xbf16>, vector<16x128xf32> -> vector<16x128xf32>
    %c0_24 = arith.constant 0 : index
    %c0_25 = arith.constant 0 : index
    %42 = vector.load %arg4[%c0_24, %c0_25] : memref<40x128xf32, #tpu.memory_space<vmem>>, vector<24x128xf32>
    tpu.vector_store %arg4[%c0_24, %c0_25], %40 {strides = array<i32>} : memref<40x128xf32, #tpu.memory_space<vmem>>, vector<24x128xf32>,
    %c24_26 = arith.constant 24 : index
    %c0_27 = arith.constant 0 : index
    %43 = vector.load %arg4[%c24_26, %c0_27] : memref<40x128xf32, #tpu.memory_space<vmem>>, vector<16x128xf32>
    tpu.vector_store %arg4[%c24_26, %c0_27], %41 {strides = array<i32>} : memref<40x128xf32, #tpu.memory_space<vmem>>, vector<16x128xf32>,
    %c0_28 = arith.constant 0 : index
    %c0_29 = arith.constant 0 : index
    %44 = vector.load %arg3[%c0_28, %c0_29] : memref<40x128xf32, #tpu.memory_space<vmem>>, vector<24x128xf32>
    %45 = arith.addf %44, %40 : vector<24x128xf32>
    %c0_30 = arith.constant 0 : index
    %c0_31 = arith.constant 0 : index
    %46 = vector.load %arg3[%c0_30, %c0_31] : memref<40x128xf32, #tpu.memory_space<vmem>>, vector<24x128xf32>
    tpu.vector_store %arg3[%c0_30, %c0_31], %45 {strides = array<i32>} : memref<40x128xf32, #tpu.memory_space<vmem>>, vector<24x128xf32>,
    %c24_32 = arith.constant 24 : index
    %c0_33 = arith.constant 0 : index
    %47 = vector.load %arg3[%c24_32, %c0_33] : memref<40x128xf32, #tpu.memory_space<vmem>>, vector<16x128xf32>
    %48 = arith.addf %47, %41 : vector<16x128xf32>
    %c24_34 = arith.constant 24 : index
    %c0_35 = arith.constant 0 : index
    %49 = vector.load %arg3[%c24_34, %c0_35] : memref<40x128xf32, #tpu.memory_space<vmem>>, vector<16x128xf32>
    tpu.vector_store %arg3[%c24_34, %c0_35], %48 {strides = array<i32>} : memref<40x128xf32, #tpu.memory_space<vmem>>, vector<16x128xf32>,
    %c0_36 = arith.constant 0 : index
    %c0_37 = arith.constant 0 : index
    %50 = vector.load %arg4[%c0_36, %c0_37] : memref<40x128xf32, #tpu.memory_space<vmem>>, vector<16x128xf32>
    %51 = arith.truncf %50 : vector<16x128xf32> to vector<16x128xbf16>
    %c16_38 = arith.constant 16 : index
    %c0_39 = arith.constant 0 : index
    %52 = vector.load %arg4[%c16_38, %c0_39] : memref<40x128xf32, #tpu.memory_space<vmem>>, vector<24x128xf32>
    %53 = arith.truncf %52 : vector<24x128xf32> to vector<24x128xbf16>
    %cst_40 = arith.constant dense<0.000000e+00> : vector<24x128xf32>
    %54 = tpu.matmul %25, %51, %cst_40 {dimension_numbers = #tpu.dot_dimension_numbers<[1], [0], [0], [1], [0, 0, 1, 1], [], []>} : vector<24x16xbf16>, vector<16x128xbf16>, vector<24x128xf32> -> vector<24x128xf32>
    %cst_41 = arith.constant dense<0.000000e+00> : vector<16x128xf32>
    %55 = tpu.matmul %23, %53, %cst_41 {dimension_numbers = #tpu.dot_dimension_numbers<[1], [0], [0], [1], [0, 0, 1, 1], [], []>} : vector<16x24xbf16>, vector<24x128xbf16>, vector<16x128xf32> -> vector<16x128xf32>
    %c0_42 = arith.constant 0 : index
    %c0_43 = arith.constant 0 : index
    %56 = vector.load %arg3[%c0_42, %c0_43] : memref<40x128xf32, #tpu.memory_space<vmem>>, vector<24x128xf32>
    %57 = arith.addf %56, %54 : vector<24x128xf32>
    %cst_44 = arith.constant 2.500000e-01 : f32
    %58 = vector.broadcast %cst_44 : f32 to vector<24x128xf32>
    %59 = arith.mulf %57, %58 : vector<24x128xf32>
    %c0_45 = arith.constant 0 : index
    %c0_46 = arith.constant 0 : index
    %60 = vector.load %arg3[%c0_45, %c0_46] : memref<40x128xf32, #tpu.memory_space<vmem>>, vector<24x128xf32>
    tpu.vector_store %arg3[%c0_45, %c0_46], %59 {strides = array<i32>} : memref<40x128xf32, #tpu.memory_space<vmem>>, vector<24x128xf32>,
    %c24_47 = arith.constant 24 : index
    %c0_48 = arith.constant 0 : index
    %61 = vector.load %arg3[%c24_47, %c0_48] : memref<40x128xf32, #tpu.memory_space<vmem>>, vector<16x128xf32>
    %62 = arith.addf %61, %55 : vector<16x128xf32>
    %cst_49 = arith.constant 2.500000e-01 : f32
    %63 = vector.broadcast %cst_49 : f32 to vector<16x128xf32>
    %64 = arith.mulf %62, %63 : vector<16x128xf32>
    %c24_50 = arith.constant 24 : index
    %c0_51 = arith.constant 0 : index
    %65 = vector.load %arg3[%c24_50, %c0_51] : memref<40x128xf32, #tpu.memory_space<vmem>>, vector<16x128xf32>
    tpu.vector_store %arg3[%c24_50, %c0_51], %64 {strides = array<i32>} : memref<40x128xf32, #tpu.memory_space<vmem>>, vector<16x128xf32>,
    return
  }
  func.func @transform_0(%arg0: i32) -> (i32, i32) {
    %c0_i32 = arith.constant 0 : i32
    %c0_i32_0 = arith.constant 0 : i32
    %c0_i32_1 = arith.constant 0 : i32
    return %c0_i32, %c0_i32_0 : i32, i32
  }
  func.func @transform_1(%arg0: i32) -> (i32, i32) {
    %c0_i32 = arith.constant 0 : i32
    %c0_i32_0 = arith.constant 0 : i32
    %c0_i32_1 = arith.constant 0 : i32
    return %c0_i32, %c0_i32_0 : i32, i32
  }
  func.func @transform_2(%arg0: i32) -> (i32, i32) {
    %c0_i32 = arith.constant 0 : i32
    %c0_i32_0 = arith.constant 0 : i32
    %c0_i32_1 = arith.constant 0 : i32
    return %c0_i32, %c0_i32_0 : i32, i32
  }
}

</mosaic_0001>

<llo_original>
// kernel: tpu_custom_call.1
$region0: #{tpu_custom_call.1}
  #allocation0 [shape = 'u32[]', space=smem, size = 0x4, offset = 0x4, fixed_abs, tag = 'smem constant byte address 0x4 - core index']
  #allocation1 [shape = 'u32[144,128]{1,0:T(1,128)}', space=vmem, size = 0x12000, scoped, tag = 'internal scratch']
  #allocation2 [shape = 'f32[40,128]{1,0:T(8,128)}', space=vmem, size = 0x5000, scoped, tag = 'scratch operand']
  %s0 = inlined_call_operand.hbm [shape: s8[16,24], index: 0, kind: input, shape index: {}]
  %s1 = inlined_call_operand.hbm [shape: f32[40,128], index: 1, kind: input, shape index: {}]
  %s2 = inlined_call_operand.hbm [shape: f32[40,128], index: 2, kind: output, shape index: {}]
  %s3 = sld [smem:[#allocation0]]
  $region26: #{tpu_custom_call.1} parent=0
    _
  %s5 = ssub.s32 1, %s3
  %s6 = scalar_select 0, %s5, %s3
  $region1: #{tpu_custom_call.1} parent=0
    #allocation3 [shape = 'u8[2048]{0}', space=vmem, size = 0x800, scoped, tag = 'input window, operand 0, single buffered']
    #allocation4 [shape = 's32[1]{0}', space=sflag, size = 0x4, scoped, tag = 'scoped memory for tpu_custom_call.1']
    #allocation5 [shape = 's32[1]{0}', space=sflag, size = 0x4, scoped, tag = 'scoped memory for tpu_custom_call.1']
    #allocation6 [shape = 'u8[20480]{0}', space=vmem, size = 0x5000, scoped, tag = 'input window, operand 1, single buffered']
    #allocation7 [shape = 's32[1]{0}', space=sflag, size = 0x4, scoped, tag = 'scoped memory for tpu_custom_call.1']
    #allocation8 [shape = 'u8[20480]{0}', space=vmem, size = 0x5000, scoped, tag = 'output window, operand 0, single buffered']
    %7 = vsyncpa [#allocation4], 0
    %8 = vsyncpa [#allocation7], 0
    %9 = vsyncpa [#allocation5], 0
    // Predicated region
    $region2: #{tpu_custom_call.1} parent=1 // pred_check
      _
    $region3: #{tpu_custom_call.1} parent=1 // pred_check_branch
      %11 = sbr.rel (0) target = $region5
    $region4: #{tpu_custom_call.1} parent=1 // pred_region
      %s13 = ssub.s32 64, 64
      %14 = vsyncadd [#allocation4], %s13
      %s15 = sshll.u32 [#allocation3], 4
      %s16 = int_to_ptr.vmem [resolvable:$true] %s15
      %21 = dma.hbm_to_vmem [thread:$0]  %s0, 64, %s16, [#allocation4], 32, 32, 2
    $region5: #{tpu_custom_call.1} parent=1 // pred_fallthru
      _
    // Predicated region
    $region6: #{tpu_custom_call.1} parent=1 // pred_check
      _
    $region7: #{tpu_custom_call.1} parent=1 // pred_check_branch
      %23 = sbr.rel (0) target = $region9
    $region8: #{tpu_custom_call.1} parent=1 // pred_region
      %s25 = ssub.s32 640, 640
      %26 = vsyncadd [#allocation7], %s25
      %s27 = sshll.u32 [#allocation6], 4
      %s28 = int_to_ptr.vmem [resolvable:$true] %s27
      %33 = dma.hbm_to_vmem [thread:$0]  %s1, 640, %s28, [#allocation7], 128, 128, 8
    $region9: #{tpu_custom_call.1} parent=1 // pred_fallthru
      _
    // Predicated region
    $region10: #{tpu_custom_call.1} parent=1 // pred_check
      _
    $region11: #{tpu_custom_call.1} parent=1 // pred_check_branch
      %35 = sbr.rel (0) target = $region13
    $region12: #{tpu_custom_call.1} parent=1 // pred_region
      %36 = dma.done [#allocation4], 64
    $region13: #{tpu_custom_call.1} parent=1 // pred_fallthru
      _
    // Predicated region
    $region14: #{tpu_custom_call.1} parent=1 // pred_check
      _
    $region15: #{tpu_custom_call.1} parent=1 // pred_check_branch
      %38 = sbr.rel (0) target = $region17
    $region16: #{tpu_custom_call.1} parent=1 // pred_region
      %39 = dma.done [#allocation7], 640
    $region17: #{tpu_custom_call.1} parent=1 // pred_fallthru
      _
    %v43 = vld [vmem:[#allocation3] sm:$0x3]
    %v44 = vld [vmem:[#allocation3 + $0x2] sm:$0x3]
    %vm45 = vnez %v43
    %vm46 = vnez %v44
    %v47 = vsel %vm45, 16843009, 0
    %v48 = vsel %vm46, 16843009, 0
    %v49 = vunpack.c.0.s8 %v47
    %v50 = vunpack.c.0.s8 %v48
    %vm51 = vcmp.ne.s32.totalorder %v49, 0
    %vm52 = vcmp.ne.s32.totalorder %v50, 0
    %v53 = vsel %vm51, 1, 0
    %v54 = vsel %vm52, 1, 0
    %v55 = vcvt.s32.f32 %v53
    %v56 = vcvt.s32.f32 %v54
    %vm57 = vcmask 195584
    %v58 = vsel %vm57, %v55, 0.0
    %59 = vadd.xlane.f32.xlu0 %v58
    %v60 = vpop.xlane.xlu0 %59
    %v61 = vsel %vm57, %v56, 0.0
    %62 = vadd.xlane.f32.xlu0 %v61
    %v63 = vpop.xlane.xlu0 %62
    %v64 = vadd.f32 %v58, %v61
    %v65 = vrot.slane %v64, 4
    %v66 = vadd.f32 %v64, %v65
    %v67 = vrot.slane %v66, 2
    %v68 = vadd.f32 %v66, %v67
    %v69 = vrot.slane %v68, 1
    %v70 = vadd.f32 %v68, %v69
    %vm71 = vcmp.gt.f32.partialorder %v60, 0.0
    %vm72 = vcmp.gt.f32.partialorder %v63, 0.0
    %v73 = vrsqrt.pop %v60
    %v74 = vrsqrt.pop %v63
    %v75 = vsel %vm71, %v73, 0.0
    %v76 = vsel %vm72, %v74, 0.0
    %vm77 = vcmp.gt.f32.partialorder %v70, 0.0
    %v78 = vrsqrt.pop %v70
    %v79 = vsel %vm77, %v78, 0.0
    %v80 = vmul.f32 %v55, %v75
    %v81 = vmul.f32 %v56, %v76
    %v82 = vmul.f32 %v80, %v79
    %v83 = vmul.f32 %v81, %v79
    %v84 = vpack.c.bf16 %v83, %v82
    %85 = vxpose.xlu0.b32.start [1/16] %v82, 128
    %86 = vxpose.xlu0.b32.cont [2/16] %v83, 128
    %87 = vxpose.xlu0.b32.cont [3/16] 0.0, 128
    %88 = vxpose.xlu0.b32.cont [4/16] 0.0, 128
    %89 = vxpose.xlu0.b32.cont [5/16] 0.0, 128
    %90 = vxpose.xlu0.b32.cont [6/16] 0.0, 128
    %91 = vxpose.xlu0.b32.cont [7/16] 0.0, 128
    %92 = vxpose.xlu0.b32.cont [8/16] 0.0, 128
    %93 = vxpose.xlu0.b32.cont [9/16] 0.0, 128
    %94 = vxpose.xlu0.b32.cont [10/16] 0.0, 128
    %95 = vxpose.xlu0.b32.cont [11/16] 0.0, 128
    %96 = vxpose.xlu0.b32.cont [12/16] 0.0, 128
    %97 = vxpose.xlu0.b32.cont [13/16] 0.0, 128
    %98 = vxpose.xlu0.b32.cont [14/16] 0.0, 128
    %99 = vxpose.xlu0.b32.cont [15/16] 0.0, 128
    %100 = vxpose.xlu0.b32.end [16/16] 0.0, 128
    %v101 = vpop.trf.xlu0
    %v102 = vpop.trf.xlu0
    %v103 = vpop.trf.xlu0
    %v104 = vpop.trf.xlu0
    %v105 = vpop.trf.xlu0
    %v106 = vpop.trf.xlu0
    %v107 = vpop.trf.xlu0
    %v108 = vpop.trf.xlu0
    %v109 = vpop.trf.xlu0
    %v110 = vpop.trf.xlu0
    %v111 = vpop.trf.xlu0
    %v112 = vpop.trf.xlu0
    %v113 = vpop.trf.xlu0
    %v114 = vpop.trf.xlu0
    %v115 = vpop.trf.xlu0
    %v116 = vpop.trf.xlu0
    %v117 = vpack.c.bf16 %v102, %v101
    %v118 = vpack.c.bf16 %v103, %v103
    %v119 = vld [vmem:[#allocation6] sm:$0xff]
    %v120 = vld [vmem:[#allocation6 + $0x8] sm:$0xff]
    %v121 = vpack.c.bf16 %v120, %v119
    %v122 = vld [vmem:[#allocation6 + $0x10] sm:$0xff]
    %v123 = vld [vmem:[#allocation6 + $0x18] sm:$0xff]
    %v124 = vld [vmem:[#allocation6 + $0x20] sm:$0xff]
    %v125 = vpack.c.bf16 %v123, %v122
    %v126 = vpack.c.bf16 %v124, %v124
    %vm127 = vcmask 130048
    %v129 = vsel %vm127, %v117, 0
    %v132 = vsel %vm127, %v118, 0
    %134 = vmatprep.subr.bf16.mxu0 0
    %135 = vmatpush1.bf16.msra.mxu0 %v121
    %136 = vmatprep.subr.bf16.mxu0 0
    %137 = vmatpush1.bf16.msra.mxu0 0
    %138 = vmatprep.subr.bf16.mxu0 0
    %139 = vmatpush1.bf16.msra.mxu0 0
    %140 = vmatprep.subr.bf16.mxu0 0
    %141 = vmatpush1.bf16.msra.mxu0 0
    %142 = vmatprep.subr.bf16.mxu0 0
    %143 = vmatpush1.bf16.msra.mxu0 0
    %144 = vmatprep.subr.bf16.mxu0 0
    %145 = vmatpush1.bf16.msra.mxu0 0
    %146 = vmatprep.subr.bf16.mxu0 0
    %147 = vmatpush1.bf16.msra.mxu0 0
    %148 = vmatprep.subr.bf16.mxu0 0
    %149 = vmatpush1.bf16.msra.mxu0 0
    %150 = vmatprep.subr.bf16.mxu0 0
    %151 = vmatpush1.bf16.msra.mxu0 0
    %152 = vmatprep.subr.bf16.mxu0 0
    %153 = vmatpush1.bf16.msra.mxu0 0
    %154 = vmatprep.subr.bf16.mxu0 0
    %155 = vmatpush1.bf16.msra.mxu0 0
    %156 = vmatprep.subr.bf16.mxu0 0
    %157 = vmatpush1.bf16.msra.mxu0 0
    %158 = vmatprep.subr.bf16.mxu0 0
    %159 = vmatpush1.bf16.msra.mxu0 0
    %160 = vmatprep.subr.bf16.mxu0 0
    %161 = vmatpush1.bf16.msra.mxu0 0
    %162 = vmatprep.subr.bf16.mxu0 0
    %163 = vmatpush1.bf16.msra.mxu0 0
    %164 = vmatprep.subr.bf16.mxu0 0
    %165 = vmatpush1.bf16.msra.mxu0 0
    %166 = vmatprep.mubr.bf16.mxu0 0
    %167 = vmatmul.mubr.bf16.gmra.mrb[0].mxu0 %v129
    %v168 = vpop.f32.mrb[0].mxu0
    %v169 = vadd.f32 0.0, %v168
    %v170 = vpop.f32.mrb[0].mxu0
    %v171 = vpop.f32.mrb[0].mxu0
    %v172 = vadd.f32 0.0, %v171
    %v173 = vpop.f32.mrb[0].mxu0
    %174 = vmatprep.mubr.bf16.mxu0 0
    %175 = vmatmul.mubr.bf16.gmra.mrb[0].mxu0 %v132
    %v176 = vpop.f32.mrb[0].mxu0
    %v177 = vadd.f32 0.0, %v176
    %v178 = vpop.f32.mrb[0].mxu0
    %v179 = vpop.f32.mrb[0].mxu0
    %v180 = vpop.f32.mrb[0].mxu0
    %181 = vdwg.mxu0
    %v183 = vsel %vm57, %v84, 0
    %vm185 = vcmask 1043456
    %v187 = vsel %vm185, %v126, 0
    %189 = vmatprep.subr.bf16.mxu0 0
    %190 = vmatpush1.bf16.msra.mxu0 %v125
    %191 = vmatprep.subr.bf16.mxu0 0
    %192 = vmatpush1.bf16.msra.mxu0 %v187
    %193 = vmatprep.subr.bf16.mxu0 0
    %194 = vmatpush1.bf16.msra.mxu0 0
    %195 = vmatprep.subr.bf16.mxu0 0
    %196 = vmatpush1.bf16.msra.mxu0 0
    %197 = vmatprep.subr.bf16.mxu0 0
    %198 = vmatpush1.bf16.msra.mxu0 0
    %199 = vmatprep.subr.bf16.mxu0 0
    %200 = vmatpush1.bf16.msra.mxu0 0
    %201 = vmatprep.subr.bf16.mxu0 0
    %202 = vmatpush1.bf16.msra.mxu0 0
    %203 = vmatprep.subr.bf16.mxu0 0
    %204 = vmatpush1.bf16.msra.mxu0 0
    %205 = vmatprep.subr.bf16.mxu0 0
    %206 = vmatpush1.bf16.msra.mxu0 0
    %207 = vmatprep.subr.bf16.mxu0 0
    %208 = vmatpush1.bf16.msra.mxu0 0
    %209 = vmatprep.subr.bf16.mxu0 0
    %210 = vmatpush1.bf16.msra.mxu0 0
    %211 = vmatprep.subr.bf16.mxu0 0
    %212 = vmatpush1.bf16.msra.mxu0 0
    %213 = vmatprep.subr.bf16.mxu0 0
    %214 = vmatpush1.bf16.msra.mxu0 0
    %215 = vmatprep.subr.bf16.mxu0 0
    %216 = vmatpush1.bf16.msra.mxu0 0
    %217 = vmatprep.subr.bf16.mxu0 0
    %218 = vmatpush1.bf16.msra.mxu0 0
    %219 = vmatprep.subr.bf16.mxu0 0
    %220 = vmatpush1.bf16.msra.mxu0 0
    %221 = vmatprep.mubr.bf16.mxu0 0
    %222 = vmatmul.mubr.bf16.gmra.mrb[0].mxu0 %v183
    %v223 = vpop.f32.mrb[0].mxu0
    %v224 = vadd.f32 0.0, %v223
    %v225 = vpop.f32.mrb[0].mxu0
    %v226 = vpop.f32.mrb[0].mxu0
    %v227 = vadd.f32 0.0, %v226
    %v228 = vpop.f32.mrb[0].mxu0
    %229 = vdwg.mxu0
    %230 = vst [vmem:[#allocation2] sm:$0xff] %v169
    %231 = vst [vmem:[#allocation2 + $0x8] sm:$0xff] %v172
    %232 = vst [vmem:[#allocation2 + $0x10] sm:$0xff] %v177
    %233 = vst [vmem:[#allocation2 + $0x18] sm:$0xff] %v224
    %234 = vst [vmem:[#allocation2 + $0x20] sm:$0xff] %v227
    %235 = vst [vmem:[#allocation8] sm:$0xff] %v169
    %236 = vst [vmem:[#allocation8 + $0x8] sm:$0xff] %v172
    %237 = vst [vmem:[#allocation8 + $0x10] sm:$0xff] %v177
    %238 = vst [vmem:[#allocation8 + $0x18] sm:$0xff] %v224
    %239 = vst [vmem:[#allocation8 + $0x20] sm:$0xff] %v227
    %v240 = vld [vmem:[#allocation2] sm:$0xff]
    %v241 = vld [vmem:[#allocation2 + $0x8] sm:$0xff]
    %v242 = vpack.c.bf16 %v241, %v240
    %v243 = vld [vmem:[#allocation2 + $0x10] sm:$0xff]
    %v244 = vld [vmem:[#allocation2 + $0x18] sm:$0xff]
    %v245 = vld [vmem:[#allocation2 + $0x20] sm:$0xff]
    %v246 = vpack.c.bf16 %v244, %v243
    %v247 = vpack.c.bf16 %v245, %v245
    %248 = vmatprep.subr.bf16.mxu0 0
    %249 = vmatpush1.bf16.msra.mxu0 %v242
    %250 = vmatprep.subr.bf16.mxu0 0
    %251 = vmatpush1.bf16.msra.mxu0 0
    %252 = vmatprep.subr.bf16.mxu0 0
    %253 = vmatpush1.bf16.msra.mxu0 0
    %254 = vmatprep.subr.bf16.mxu0 0
    %255 = vmatpush1.bf16.msra.mxu0 0
    %256 = vmatprep.subr.bf16.mxu0 0
    %257 = vmatpush1.bf16.msra.mxu0 0
    %258 = vmatprep.subr.bf16.mxu0 0
    %259 = vmatpush1.bf16.msra.mxu0 0
    %260 = vmatprep.subr.bf16.mxu0 0
    %261 = vmatpush1.bf16.msra.mxu0 0
    %262 = vmatprep.subr.bf16.mxu0 0
    %263 = vmatpush1.bf16.msra.mxu0 0
    %264 = vmatprep.subr.bf16.mxu0 0
    %265 = vmatpush1.bf16.msra.mxu0 0
    %266 = vmatprep.subr.bf16.mxu0 0
    %267 = vmatpush1.bf16.msra.mxu0 0
    %268 = vmatprep.subr.bf16.mxu0 0
    %269 = vmatpush1.bf16.msra.mxu0 0
    %270 = vmatprep.subr.bf16.mxu0 0
    %271 = vmatpush1.bf16.msra.mxu0 0
    %272 = vmatprep.subr.bf16.mxu0 0
    %273 = vmatpush1.bf16.msra.mxu0 0
    %274 = vmatprep.subr.bf16.mxu0 0
    %275 = vmatpush1.bf16.msra.mxu0 0
    %276 = vmatprep.subr.bf16.mxu0 0
    %277 = vmatpush1.bf16.msra.mxu0 0
    %278 = vmatprep.subr.bf16.mxu0 0
    %279 = vmatpush1.bf16.msra.mxu0 0
    %280 = vmatprep.mubr.bf16.mxu0 0
    %281 = vmatmul.mubr.bf16.gmra.mrb[0].mxu0 %v129
    %v282 = vpop.f32.mrb[0].mxu0
    %v283 = vadd.f32 0.0, %v282
    %v284 = vpop.f32.mrb[0].mxu0
    %v285 = vpop.f32.mrb[0].mxu0
    %v286 = vadd.f32 0.0, %v285
    %v287 = vpop.f32.mrb[0].mxu0
    %288 = vmatprep.mubr.bf16.mxu0 0
    %289 = vmatmul.mubr.bf16.gmra.mrb[0].mxu0 %v132
    %v290 = vpop.f32.mrb[0].mxu0
    %v291 = vadd.f32 0.0, %v290
    %v292 = vpop.f32.mrb[0].mxu0
    %v293 = vpop.f32.mrb[0].mxu0
    %v294 = vpop.f32.mrb[0].mxu0
    %295 = vdwg.mxu0
    %v297 = vsel %vm185, %v247, 0
    %299 = vmatprep.subr.bf16.mxu0 0
    %300 = vmatpush1.bf16.msra.mxu0 %v246
    %301 = vmatprep.subr.bf16.mxu0 0
    %302 = vmatpush1.bf16.msra.mxu0 %v297
    %303 = vmatprep.subr.bf16.mxu0 0
    %304 = vmatpush1.bf16.msra.mxu0 0
    %305 = vmatprep.subr.bf16.mxu0 0
    %306 = vmatpush1.bf16.msra.mxu0 0
    %307 = vmatprep.subr.bf16.mxu0 0
    %308 = vmatpush1.bf16.msra.mxu0 0
    %309 = vmatprep.subr.bf16.mxu0 0
    %310 = vmatpush1.bf16.msra.mxu0 0
    %311 = vmatprep.subr.bf16.mxu0 0
    %312 = vmatpush1.bf16.msra.mxu0 0
    %313 = vmatprep.subr.bf16.mxu0 0
    %314 = vmatpush1.bf16.msra.mxu0 0
    %315 = vmatprep.subr.bf16.mxu0 0
    %316 = vmatpush1.bf16.msra.mxu0 0
    %317 = vmatprep.subr.bf16.mxu0 0
    %318 = vmatpush1.bf16.msra.mxu0 0
    %319 = vmatprep.subr.bf16.mxu0 0
    %320 = vmatpush1.bf16.msra.mxu0 0
    %321 = vmatprep.subr.bf16.mxu0 0
    %322 = vmatpush1.bf16.msra.mxu0 0
    %323 = vmatprep.subr.bf16.mxu0 0
    %324 = vmatpush1.bf16.msra.mxu0 0
    %325 = vmatprep.subr.bf16.mxu0 0
    %326 = vmatpush1.bf16.msra.mxu0 0
    %327 = vmatprep.subr.bf16.mxu0 0
    %328 = vmatpush1.bf16.msra.mxu0 0
    %329 = vmatprep.subr.bf16.mxu0 0
    %330 = vmatpush1.bf16.msra.mxu0 0
    %331 = vmatprep.mubr.bf16.mxu0 0
    %332 = vmatmul.mubr.bf16.gmra.mrb[0].mxu0 %v183
    %v333 = vpop.f32.mrb[0].mxu0
    %v334 = vadd.f32 0.0, %v333
    %v335 = vpop.f32.mrb[0].mxu0
    %v336 = vpop.f32.mrb[0].mxu0
    %v337 = vadd.f32 0.0, %v336
    %v338 = vpop.f32.mrb[0].mxu0
    %339 = vdwg.mxu0
    %340 = vst [vmem:[#allocation2] sm:$0xff] %v283
    %341 = vst [vmem:[#allocation2 + $0x8] sm:$0xff] %v286
    %342 = vst [vmem:[#allocation2 + $0x10] sm:$0xff] %v291
    %343 = vst [vmem:[#allocation2 + $0x18] sm:$0xff] %v334
    %344 = vst [vmem:[#allocation2 + $0x20] sm:$0xff] %v337
    %v345 = vld [vmem:[#allocation8] sm:$0xff]
    %v346 = vld [vmem:[#allocation8 + $0x8] sm:$0xff]
    %v347 = vld [vmem:[#allocation8 + $0x10] sm:$0xff]
    %v348 = vadd.f32 %v345, %v283
    %v349 = vadd.f32 %v346, %v286
    %v350 = vadd.f32 %v347, %v291
    %351 = vst [vmem:[#allocation8] sm:$0xff] %v348
    %352 = vst [vmem:[#allocation8 + $0x8] sm:$0xff] %v349
    %353 = vst [vmem:[#allocation8 + $0x10] sm:$0xff] %v350
    %v354 = vld [vmem:[#allocation8 + $0x18] sm:$0xff]
    %v355 = vld [vmem:[#allocation8 + $0x20] sm:$0xff]
    %v356 = vadd.f32 %v354, %v334
    %v357 = vadd.f32 %v355, %v337
    %358 = vst [vmem:[#allocation8 + $0x18] sm:$0xff] %v356
    %359 = vst [vmem:[#allocation8 + $0x20] sm:$0xff] %v357
    %v360 = vld [vmem:[#allocation2] sm:$0xff]
    %v361 = vld [vmem:[#allocation2 + $0x8] sm:$0xff]
    %v362 = vpack.c.bf16 %v361, %v360
    %v363 = vld [vmem:[#allocation2 + $0x10] sm:$0xff]
    %v364 = vld [vmem:[#allocation2 + $0x18] sm:$0xff]
    %v365 = vld [vmem:[#allocation2 + $0x20] sm:$0xff]
    %v366 = vpack.c.bf16 %v364, %v363
    %v367 = vpack.c.bf16 %v365, %v365
    %368 = vmatprep.subr.bf16.mxu0 0
    %369 = vmatpush1.bf16.msra.mxu0 %v362
    %370 = vmatprep.subr.bf16.mxu0 0
    %371 = vmatpush1.bf16.msra.mxu0 0
    %372 = vmatprep.subr.bf16.mxu0 0
    %373 = vmatpush1.bf16.msra.mxu0 0
    %374 = vmatprep.subr.bf16.mxu0 0
    %375 = vmatpush1.bf16.msra.mxu0 0
    %376 = vmatprep.subr.bf16.mxu0 0
    %377 = vmatpush1.bf16.msra.mxu0 0
    %378 = vmatprep.subr.bf16.mxu0 0
    %379 = vmatpush1.bf16.msra.mxu0 0
    %380 = vmatprep.subr.bf16.mxu0 0
    %381 = vmatpush1.bf16.msra.mxu0 0
    %382 = vmatprep.subr.bf16.mxu0 0
    %383 = vmatpush1.bf16.msra.mxu0 0
    %384 = vmatprep.subr.bf16.mxu0 0
    %385 = vmatpush1.bf16.msra.mxu0 0
    %386 = vmatprep.subr.bf16.mxu0 0
    %387 = vmatpush1.bf16.msra.mxu0 0
    %388 = vmatprep.subr.bf16.mxu0 0
    %389 = vmatpush1.bf16.msra.mxu0 0
    %390 = vmatprep.subr.bf16.mxu0 0
    %391 = vmatpush1.bf16.msra.mxu0 0
    %392 = vmatprep.subr.bf16.mxu0 0
    %393 = vmatpush1.bf16.msra.mxu0 0
    %394 = vmatprep.subr.bf16.mxu0 0
    %395 = vmatpush1.bf16.msra.mxu0 0
    %396 = vmatprep.subr.bf16.mxu0 0
    %397 = vmatpush1.bf16.msra.mxu0 0
    %398 = vmatprep.subr.bf16.mxu0 0
    %399 = vmatpush1.bf16.msra.mxu0 0
    %400 = vmatprep.mubr.bf16.mxu0 0
    %401 = vmatmul.mubr.bf16.gmra.mrb[0].mxu0 %v129
    %v402 = vpop.f32.mrb[0].mxu0
    %v403 = vadd.f32 0.0, %v402
    %v404 = vpop.f32.mrb[0].mxu0
    %v405 = vpop.f32.mrb[0].mxu0
    %v406 = vadd.f32 0.0, %v405
    %v407 = vpop.f32.mrb[0].mxu0
    %408 = vmatprep.mubr.bf16.mxu0 0
    %409 = vmatmul.mubr.bf16.gmra.mrb[0].mxu0 %v132
    %v410 = vpop.f32.mrb[0].mxu0
    %v411 = vadd.f32 0.0, %v410
    %v412 = vpop.f32.mrb[0].mxu0
    %v413 = vpop.f32.mrb[0].mxu0
    %v414 = vpop.f32.mrb[0].mxu0
    %415 = vdwg.mxu0
    %v417 = vsel %vm185, %v367, 0
    %419 = vmatprep.subr.bf16.mxu0 0
    %420 = vmatpush1.bf16.msra.mxu0 %v366
    %421 = vmatprep.subr.bf16.mxu0 0
    %422 = vmatpush1.bf16.msra.mxu0 %v417
    %423 = vmatprep.subr.bf16.mxu0 0
    %424 = vmatpush1.bf16.msra.mxu0 0
    %425 = vmatprep.subr.bf16.mxu0 0
    %426 = vmatpush1.bf16.msra.mxu0 0
    %427 = vmatprep.subr.bf16.mxu0 0
    %428 = vmatpush1.bf16.msra.mxu0 0
    %429 = vmatprep.subr.bf16.mxu0 0
    %430 = vmatpush1.bf16.msra.mxu0 0
    %431 = vmatprep.subr.bf16.mxu0 0
    %432 = vmatpush1.bf16.msra.mxu0 0
    %433 = vmatprep.subr.bf16.mxu0 0
    %434 = vmatpush1.bf16.msra.mxu0 0
    %435 = vmatprep.subr.bf16.mxu0 0
    %436 = vmatpush1.bf16.msra.mxu0 0
    %437 = vmatprep.subr.bf16.mxu0 0
    %438 = vmatpush1.bf16.msra.mxu0 0
    %439 = vmatprep.subr.bf16.mxu0 0
    %440 = vmatpush1.bf16.msra.mxu0 0
    %441 = vmatprep.subr.bf16.mxu0 0
    %442 = vmatpush1.bf16.msra.mxu0 0
    %443 = vmatprep.subr.bf16.mxu0 0
    %444 = vmatpush1.bf16.msra.mxu0 0
    %445 = vmatprep.subr.bf16.mxu0 0
    %446 = vmatpush1.bf16.msra.mxu0 0
    %447 = vmatprep.subr.bf16.mxu0 0
    %448 = vmatpush1.bf16.msra.mxu0 0
    %449 = vmatprep.subr.bf16.mxu0 0
    %450 = vmatpush1.bf16.msra.mxu0 0
    %451 = vmatprep.mubr.bf16.mxu0 0
    %452 = vmatmul.mubr.bf16.gmra.mrb[0].mxu0 %v183
    %v453 = vpop.f32.mrb[0].mxu0
    %v454 = vadd.f32 0.0, %v453
    %v455 = vpop.f32.mrb[0].mxu0
    %v456 = vpop.f32.mrb[0].mxu0
    %v457 = vadd.f32 0.0, %v456
    %v458 = vpop.f32.mrb[0].mxu0
    %459 = vdwg.mxu0
    %v460 = vld [vmem:[#allocation8] sm:$0xff]
    %v461 = vld [vmem:[#allocation8 + $0x8] sm:$0xff]
    %v462 = vld [vmem:[#allocation8 + $0x10] sm:$0xff]
    %v463 = vadd.f32 %v460, %v403
    %v464 = vadd.f32 %v461, %v406
    %v465 = vadd.f32 %v462, %v411
    %v466 = vmul.f32 %v463, 0.25
    %v467 = vmul.f32 %v464, 0.25
    %v468 = vmul.f32 %v465, 0.25
    %469 = vst [vmem:[#allocation8] sm:$0xff] %v466
    %470 = vst [vmem:[#allocation8 + $0x8] sm:$0xff] %v467
    %471 = vst [vmem:[#allocation8 + $0x10] sm:$0xff] %v468
    %v472 = vld [vmem:[#allocation8 + $0x18] sm:$0xff]
    %v473 = vld [vmem:[#allocation8 + $0x20] sm:$0xff]
    %v474 = vadd.f32 %v472, %v454
    %v475 = vadd.f32 %v473, %v457
    %v476 = vmul.f32 %v474, 0.25
    %v477 = vmul.f32 %v475, 0.25
    %478 = vst [vmem:[#allocation8 + $0x18] sm:$0xff] %v476
    %479 = vst [vmem:[#allocation8 + $0x20] sm:$0xff] %v477
    // Predicated region
    $region18: #{tpu_custom_call.1} parent=1 // pred_check
      _
    $region19: #{tpu_custom_call.1} parent=1 // pred_check_branch
      %481 = sbr.rel (0) target = $region21
    $region20: #{tpu_custom_call.1} parent=1 // pred_region
      %s483 = ssub.s32 640, 640
      %484 = vsyncadd [#allocation5], %s483
      %s485 = sshll.u32 [#allocation8], 4
      %s486 = int_to_ptr.vmem [resolvable:$true] %s485
      %491 = dma.vmem_to_hbm [thread:$0]  %s486, 640, %s2, [#allocation5], 128, 128, 8
    $region21: #{tpu_custom_call.1} parent=1 // pred_fallthru
      _
    // Predicated region
    $region22: #{tpu_custom_call.1} parent=1 // pred_check
      _
    $region23: #{tpu_custom_call.1} parent=1 // pred_check_branch
      %493 = sbr.rel (0) target = $region25
    $region24: #{tpu_custom_call.1} parent=1 // pred_region
      %494 = dma.done [#allocation5], 640
    $region25: #{tpu_custom_call.1} parent=1 // pred_fallthru
      _
    %495 = vsyncpa [#allocation4], 1
    %496 = vsyncpa [#allocation7], 1
    %497 = vsyncpa [#allocation5], 1

</llo_original>
